<compile_context>
chip_gen: v5e
topology: v5e:2x2
jax: 0.10.0
libtpu: 0.0.40
codegen_flags: <defaults>
</compile_context>

<pallas_src>
import functools

import jax
import jax.numpy as jnp
from jax.experimental import pallas as pl
from jax.experimental.pallas import tpu as pltpu

_LANE = 128      # lane width (last dim)
_SUBLANE = 8     # sublane width (second-to-last dim)


def _round_up(x, m):
    return ((x + m - 1) // m) * m


def _pad_dim(d):
    # Minimum 128 lanes; 256-align larger dims so v6e/v7x's 2x256^2 MXU is
    # fully fed (v5e's 128^2 MXU is already matched by 128 padding).
    return _round_up(d, 256 if d > _LANE else _LANE)


def _mlp_kernel(*refs, num_layers: int):
    """Fused MLP: refs = (x_ref, w0, b0, w1, b1, ..., o_ref).

    h = x; for each layer: h = h @ W + b (ReLU between all but the last).
    Weight feature dims are zero-padded, so padded lanes stay exactly zero
    through every layer and all matmuls/stores are lane-dense.
    """
    x_ref = refs[0]
    o_ref = refs[-1]
    h = x_ref[...]                                     # f32 activations
    for l in range(num_layers):
        w = refs[1 + 2 * l][...]
        b = refs[2 + 2 * l][...]
        # MXU matmul in the weights' dtype (bf16 fast path on all gens),
        # f32 accumulation; bias-add / ReLU stay f32 on the VPU.
        h = jnp.dot(h.astype(w.dtype), w,
                    preferred_element_type=jnp.float32) + b
        if l < num_layers - 1:
            h = jnp.maximum(h, 0.0)
    o_ref[...] = h                                     # o_ref is f32


def prepare_params(params, matmul_dtype=jnp.bfloat16):
    """Zero-pad feature dims ONCE (hoisted out of the forward hot path).

    params: list of (w, b) with w: [in_f, out_f] (transpose of PyTorch's
    nn.Linear weight) and b: [out_f].
    Returns (flat_padded_params, out_features).
    """
    padded = []
    prev_pad = None
    for li, (w, b) in enumerate(params):
        in_f, out_f = w.shape
        # Layer 0 keeps its true input width (x is passed unpadded); deeper
        # layers must accept the previous layer's padded activation width.
        in_pad = in_f if li == 0 else prev_pad
        out_pad = _pad_dim(out_f)
        w_p = (jnp.zeros((in_pad, out_pad), matmul_dtype)
               .at[:in_f, :out_f].set(w.astype(matmul_dtype)))
        b_p = (jnp.zeros((1, out_pad), jnp.float32)
               .at[:, :out_f].set(jnp.reshape(b, (1, out_f)).astype(jnp.float32)))
        padded.extend((w_p, b_p))
        prev_pad = out_pad
    return tuple(padded), params[-1][0].shape[1]


def _choose_batch_tiling(batch, max_tile):
    """Whole batch as one tile when small; otherwise 128-multiple tiles and
    at least 2 tiles so v7x's two TensorCores both get work."""
    if batch <= 2 * _LANE:
        return batch, 1
    tile = min(max_tile, _round_up(pl.cdiv(batch, 2), _LANE))
    return tile, pl.cdiv(batch, tile)


def net_forward(x, padded_params, *, out_features, max_batch_tile=4096):
    """Forward pass of Net as a single fused Pallas call (pre-padded params)."""
    batch, in_f = x.shape
    num_layers = len(padded_params) // 2
    out_pad = padded_params[-1].shape[-1]

    tile_m, grid_m = _choose_batch_tiling(batch, max_batch_tile)

    # x: unpadded, full feature dim per block (allowed: equals the array dim).
    in_specs = [pl.BlockSpec((tile_m, in_f), lambda i: (i, 0))]
    for p in padded_params:
        # Weights/biases: full-array blocks, same block every grid step
        # -> stay VMEM-resident while batch tiles stream through.
        in_specs.append(pl.BlockSpec(p.shape, lambda i: (0, 0)))

    # Explicit VMEM budget: double-buffered x/out tiles + resident params
    # (BlockSpec double-buffers every operand by default) + scratch margin.
    param_bytes = sum(int(p.size) * p.dtype.itemsize for p in padded_params)
    x_bytes = tile_m * in_f * x.dtype.itemsize
    o_bytes = tile_m * out_pad * 4
    vmem_bytes = 2 * (x_bytes + o_bytes + param_bytes) + (2 << 20)
    vmem_limit = int(min(max(vmem_bytes, 8 << 20), 48 << 20))

    kernel = functools.partial(_mlp_kernel, num_layers=num_layers)
    out_padded = pl.pallas_call(
        kernel,
        out_shape=jax.ShapeDtypeStruct((batch, out_pad), jnp.float32),
        grid=(grid_m,),
        in_specs=in_specs,
        out_specs=pl.BlockSpec((tile_m, out_pad), lambda i: (i, 0)),
        compiler_params=pltpu.CompilerParams(
            # Batch tiles are independent -> v7x's 2 TensorCores split them.
            dimension_semantics=("parallel",),
            vmem_limit_bytes=vmem_limit,
        ),
    )(x, *padded_params)

    # Strip feature padding only (batch is already exact).
    return out_padded[:, :out_features]


def make_forward(params, *, matmul_dtype=jnp.bfloat16, max_batch_tile=4096):
    """Pad params once, return a jitted forward(x) closure."""
    padded, out_f = prepare_params(params, matmul_dtype)
    fwd = jax.jit(functools.partial(net_forward, out_features=out_f,
                                    max_batch_tile=max_batch_tile))
    return lambda x: fwd(x, padded)


def init_params(layers, key):
    """Deterministic init mimicking PyTorch nn.Linear defaults:
    U(-1/sqrt(fan_in), 1/sqrt(fan_in)) for both weight and bias."""
    params = []
    for in_f, out_f in zip(layers, layers[1:]):
        key, kw, kb = jax.random.split(key, 3)
        bound = 1.0 / jnp.sqrt(jnp.float32(in_f))
        # Stored transposed relative to PyTorch: [in_features, out_features].
        w = jax.random.uniform(kw, (in_f, out_f), jnp.float32, -bound, bound)
        b = jax.random.uniform(kb, (out_f,), jnp.float32, -bound, bound)
        params.append((w, b))
    return params


if __name__ == "__main__":
    # Layers = [32, 64, 64, 16]  (input 32 -> hidden 64 -> hidden 64 -> output 16)
    layers = [32, 64, 64, 16]
    batch = 8

    key = jax.random.PRNGKey(0)
    key, kx = jax.random.split(key)
    x = jax.random.normal(kx, (batch, layers[0]), dtype=jnp.float32)
    params = init_params(layers, key)

    # Pure-JAX f32 reference (same math, unpadded, no Pallas).
    ref = x
    for i, (w, b) in enumerate(params):
        ref = ref @ w + b
        if i < len(params) - 1:
            ref = jnp.maximum(ref, 0.0)

    # f32 parity path: tight tolerance against the reference.
    fwd_f32 = make_forward(params, matmul_dtype=jnp.float32)
    out_f32 = jax.block_until_ready(fwd_f32(x))
    assert out_f32.shape == (batch, layers[-1])
    assert jnp.allclose(out_f32, ref, atol=1e-5, rtol=1e-5)

    # bf16-MXU fast path (default for perf): looser tolerance vs f32 ref.
    fwd_bf16 = make_forward(params, matmul_dtype=jnp.bfloat16)
    out_bf16 = jax.block_until_ready(fwd_bf16(x))
    assert out_bf16.shape == (batch, layers[-1])
    assert jnp.allclose(out_bf16, ref, atol=5e-2, rtol=5e-2)

    print("KERNEL_OK")
</pallas_src>

<mosaic_0001>
module attributes {stable_mosaic.version = 11 : i64} {
  func.func @_mlp_kernel(%arg0: i32, %arg1: memref<8x32xf32, #tpu.memory_space<vmem>>, %arg2: memref<32x128xf32, #tpu.memory_space<vmem>>, %arg3: memref<1x128xf32, #tpu.memory_space<vmem>>, %arg4: memref<128x128xf32, #tpu.memory_space<vmem>>, %arg5: memref<1x128xf32, #tpu.memory_space<vmem>>, %arg6: memref<128x128xf32, #tpu.memory_space<vmem>>, %arg7: memref<1x128xf32, #tpu.memory_space<vmem>>, %arg8: memref<8x128xf32, #tpu.memory_space<vmem>>) attributes {dimension_semantics = [#tpu.dimension_semantics<parallel>], iteration_bounds = array<i64: 1>, scalar_prefetch = 0 : i64, scratch_operands = 0 : i64, tpu.core_type = #tpu.core_type<tc>, window_params = [{transform_indices = @transform_0, window_bounds = array<i64: 8, 32>}, {pipeline_mode = #tpu.pipeline_mode<synchronous>, transform_indices = @transform_1, window_bounds = array<i64: 32, 128>}, {pipeline_mode = #tpu.pipeline_mode<synchronous>, transform_indices = @transform_2, window_bounds = array<i64: 1, 128>}, {pipeline_mode = #tpu.pipeline_mode<synchronous>, transform_indices = @transform_3, window_bounds = array<i64: 128, 128>}, {pipeline_mode = #tpu.pipeline_mode<synchronous>, transform_indices = @transform_4, window_bounds = array<i64: 1, 128>}, {pipeline_mode = #tpu.pipeline_mode<synchronous>, transform_indices = @transform_5, window_bounds = array<i64: 128, 128>}, {pipeline_mode = #tpu.pipeline_mode<synchronous>, transform_indices = @transform_6, window_bounds = array<i64: 1, 128>}, {transform_indices = @transform_7, window_bounds = array<i64: 8, 128>}]} {
    %c0 = arith.constant 0 : index
    %c0_0 = arith.constant 0 : index
    %0 = vector.load %arg1[%c0, %c0_0] : memref<8x32xf32, #tpu.memory_space<vmem>>, vector<8x32xf32>
    %c0_1 = arith.constant 0 : index
    %c0_2 = arith.constant 0 : index
    %1 = vector.load %arg2[%c0_1, %c0_2] : memref<32x128xf32, #tpu.memory_space<vmem>>, vector<32x128xf32>
    %c0_3 = arith.constant 0 : index
    %c0_4 = arith.constant 0 : index
    %2 = vector.load %arg3[%c0_3, %c0_4] : memref<1x128xf32, #tpu.memory_space<vmem>>, vector<1x128xf32>
    %cst = arith.constant dense<0.000000e+00> : vector<8x128xf32>
    %3 = tpu.matmul %0, %1, %cst {dimension_numbers = #tpu.dot_dimension_numbers<[1], [0], [0], [1], [0, 0, 1, 1], [], []>} : vector<8x32xf32>, vector<32x128xf32>, vector<8x128xf32> -> vector<8x128xf32>
    %4 = vector.broadcast %2 : vector<1x128xf32> to vector<8x128xf32>
    %5 = arith.addf %3, %4 : vector<8x128xf32>
    %cst_5 = arith.constant 0.000000e+00 : f32
    %6 = vector.broadcast %cst_5 : f32 to vector<8x128xf32>
    %7 = arith.maximumf %5, %6 : vector<8x128xf32>
    %c0_6 = arith.constant 0 : index
    %c0_7 = arith.constant 0 : index
    %8 = vector.load %arg4[%c0_6, %c0_7] : memref<128x128xf32, #tpu.memory_space<vmem>>, vector<128x128xf32>
    %c0_8 = arith.constant 0 : index
    %c0_9 = arith.constant 0 : index
    %9 = vector.load %arg5[%c0_8, %c0_9] : memref<1x128xf32, #tpu.memory_space<vmem>>, vector<1x128xf32>
    %cst_10 = arith.constant dense<0.000000e+00> : vector<8x128xf32>
    %10 = tpu.matmul %7, %8, %cst_10 {dimension_numbers = #tpu.dot_dimension_numbers<[1], [0], [0], [1], [0, 0, 1, 1], [], []>} : vector<8x128xf32>, vector<128x128xf32>, vector<8x128xf32> -> vector<8x128xf32>
    %11 = vector.broadcast %9 : vector<1x128xf32> to vector<8x128xf32>
    %12 = arith.addf %10, %11 : vector<8x128xf32>
    %cst_11 = arith.constant 0.000000e+00 : f32
    %13 = vector.broadcast %cst_11 : f32 to vector<8x128xf32>
    %14 = arith.maximumf %12, %13 : vector<8x128xf32>
    %c0_12 = arith.constant 0 : index
    %c0_13 = arith.constant 0 : index
    %15 = vector.load %arg6[%c0_12, %c0_13] : memref<128x128xf32, #tpu.memory_space<vmem>>, vector<128x128xf32>
    %c0_14 = arith.constant 0 : index
    %c0_15 = arith.constant 0 : index
    %16 = vector.load %arg7[%c0_14, %c0_15] : memref<1x128xf32, #tpu.memory_space<vmem>>, vector<1x128xf32>
    %cst_16 = arith.constant dense<0.000000e+00> : vector<8x128xf32>
    %17 = tpu.matmul %14, %15, %cst_16 {dimension_numbers = #tpu.dot_dimension_numbers<[1], [0], [0], [1], [0, 0, 1, 1], [], []>} : vector<8x128xf32>, vector<128x128xf32>, vector<8x128xf32> -> vector<8x128xf32>
    %18 = vector.broadcast %16 : vector<1x128xf32> to vector<8x128xf32>
    %19 = arith.addf %17, %18 : vector<8x128xf32>
    %c0_17 = arith.constant 0 : index
    %c0_18 = arith.constant 0 : index
    %20 = vector.load %arg8[%c0_17, %c0_18] : memref<8x128xf32, #tpu.memory_space<vmem>>, vector<8x128xf32>
    tpu.vector_store %arg8[%c0_17, %c0_18], %19 {strides = array<i32>} : memref<8x128xf32, #tpu.memory_space<vmem>>, vector<8x128xf32>,
    return
  }
  func.func @transform_0(%arg0: i32) -> (i32, i32) {
    %c0_i32 = arith.constant 0 : i32
    %c0_i32_0 = arith.constant 0 : i32
    return %arg0, %c0_i32 : i32, i32
  }
  func.func @transform_1(%arg0: i32) -> (i32, i32) {
    %c0_i32 = arith.constant 0 : i32
    %c0_i32_0 = arith.constant 0 : i32
    %c0_i32_1 = arith.constant 0 : i32
    return %c0_i32, %c0_i32_0 : i32, i32
  }
  func.func @transform_2(%arg0: i32) -> (i32, i32) {
    %c0_i32 = arith.constant 0 : i32
    %c0_i32_0 = arith.constant 0 : i32
    %c0_i32_1 = arith.constant 0 : i32
    return %c0_i32, %c0_i32_0 : i32, i32
  }
  func.func @transform_3(%arg0: i32) -> (i32, i32) {
    %c0_i32 = arith.constant 0 : i32
    %c0_i32_0 = arith.constant 0 : i32
    %c0_i32_1 = arith.constant 0 : i32
    return %c0_i32, %c0_i32_0 : i32, i32
  }
  func.func @transform_4(%arg0: i32) -> (i32, i32) {
    %c0_i32 = arith.constant 0 : i32
    %c0_i32_0 = arith.constant 0 : i32
    %c0_i32_1 = arith.constant 0 : i32
    return %c0_i32, %c0_i32_0 : i32, i32
  }
  func.func @transform_5(%arg0: i32) -> (i32, i32) {
    %c0_i32 = arith.constant 0 : i32
    %c0_i32_0 = arith.constant 0 : i32
    %c0_i32_1 = arith.constant 0 : i32
    return %c0_i32, %c0_i32_0 : i32, i32
  }
  func.func @transform_6(%arg0: i32) -> (i32, i32) {
    %c0_i32 = arith.constant 0 : i32
    %c0_i32_0 = arith.constant 0 : i32
    %c0_i32_1 = arith.constant 0 : i32
    return %c0_i32, %c0_i32_0 : i32, i32
  }
  func.func @transform_7(%arg0: i32) -> (i32, i32) {
    %c0_i32 = arith.constant 0 : i32
    %c0_i32_0 = arith.constant 0 : i32
    return %arg0, %c0_i32 : i32, i32
  }
}

</mosaic_0001>

<llo_original>
// kernel: net_forward.1
$region0: #{net_forward.1}
  #allocation0 [shape = 'u32[]', space=smem, size = 0x4, offset = 0x4, fixed_abs, tag = 'smem constant byte address 0x4 - core index']
  #allocation1 [shape = 'u32[72,128]{1,0:T(1,128)}', space=vmem, size = 0x9000, scoped, tag = 'internal scratch']
  %s0 = inlined_call_operand.hbm [shape: f32[8,32], index: 0, kind: input, shape index: {}]
  %s1 = inlined_call_operand.hbm [shape: f32[32,128], index: 1, kind: input, shape index: {}]
  %s2 = inlined_call_operand.vmem [shape: f32[1,128], index: 2, kind: input, shape index: {}]
  %s3 = inlined_call_operand.hbm [shape: f32[128,128], index: 3, kind: input, shape index: {}]
  %s4 = inlined_call_operand.vmem [shape: f32[1,128], index: 4, kind: input, shape index: {}]
  %s5 = inlined_call_operand.hbm [shape: f32[128,128], index: 5, kind: input, shape index: {}]
  %s6 = inlined_call_operand.vmem [shape: f32[1,128], index: 6, kind: input, shape index: {}]
  %s7 = inlined_call_operand.hbm [shape: f32[8,128], index: 7, kind: output, shape index: {}]
  %s8 = sld [smem:[#allocation0]]
  $region54: #{net_forward.1} parent=0
    _
  %s10 = ssub.s32 1, %s8
  %s11 = scalar_select 0, %s10, %s8
  $region1: #{net_forward.1} parent=0
    #allocation2 [shape = 'u8[4096]{0}', space=vmem, size = 0x1000, scoped, tag = 'input window, operand 0, single buffered']
    #allocation3 [shape = 's32[1]{0}', space=sflag, size = 0x4, scoped, tag = 'scoped memory for net_forward.1']
    #allocation4 [shape = 's32[1]{0}', space=sflag, size = 0x4, scoped, tag = 'scoped memory for net_forward.1']
    #allocation5 [shape = 'u8[16384]{0}', space=vmem, size = 0x4000, scoped, tag = 'input window, operand 1, single buffered']
    #allocation6 [shape = 's32[1]{0}', space=sflag, size = 0x4, scoped, tag = 'scoped memory for net_forward.1']
    #allocation7 [shape = 'u8[65536]{0}', space=vmem, size = 0x10000, scoped, tag = 'input window, operand 3, single buffered']
    #allocation8 [shape = 'u8[65536]{0}', space=vmem, size = 0x10000, scoped, tag = 'input window, operand 5, single buffered']
    #allocation9 [shape = 's32[1]{0}', space=sflag, size = 0x4, scoped, tag = 'scoped memory for net_forward.1']
    #allocation10 [shape = 'u8[4096]{0}', space=vmem, size = 0x1000, scoped, tag = 'output window, operand 0, single buffered']
    %12 = vsyncpa [#allocation3], 0
    %13 = vsyncpa [#allocation6], 0
    %14 = vsyncpa [#allocation9], 0
    %15 = vsyncpa [#allocation4], 0
    // Predicated region
    $region2: #{net_forward.1} parent=1 // pred_check
      _
    $region3: #{net_forward.1} parent=1 // pred_check_branch
      %17 = sbr.rel (0) target = $region5
    $region4: #{net_forward.1} parent=1 // pred_region
      %19 = vsyncadd [#allocation3], 0
      %s21 = sshll.u32 %s0, 4
      %s22 = int_to_ptr.hbm [resolvable:$true] %s21
      %s23 = sshll.u32 [#allocation2], 4
      %s24 = int_to_ptr.vmem [resolvable:$true] %s23
      %26 = dma.hbm_to_vmem [thread:$0]  %s22, 128, %s24, [#allocation3]
    $region5: #{net_forward.1} parent=1 // pred_fallthru
      _
    // Predicated region
    $region6: #{net_forward.1} parent=1 // pred_check
      _
    $region7: #{net_forward.1} parent=1 // pred_check_branch
      %28 = sbr.rel (0) target = $region9
    $region8: #{net_forward.1} parent=1 // pred_region
      %30 = vsyncadd [#allocation6], 0
      %s31 = sshll.u32 %s1, 4
      %s32 = int_to_ptr.hbm [resolvable:$true] %s31
      %s33 = sshll.u32 [#allocation5], 4
      %s34 = int_to_ptr.vmem [resolvable:$true] %s33
      %39 = dma.hbm_to_vmem [thread:$0]  %s32, 512, %s34, [#allocation6], 128, 128, 8
    $region9: #{net_forward.1} parent=1 // pred_fallthru
      _
    // Predicated region
    $region10: #{net_forward.1} parent=1 // pred_check
      _
    $region11: #{net_forward.1} parent=1 // pred_check_branch
      %41 = sbr.rel (0) target = $region13
    $region12: #{net_forward.1} parent=1 // pred_region
      _
    $region13: #{net_forward.1} parent=1 // pred_fallthru
      _
    // Predicated region
    $region14: #{net_forward.1} parent=1 // pred_check
      _
    $region15: #{net_forward.1} parent=1 // pred_check_branch
      %43 = sbr.rel (0) target = $region17
    $region16: #{net_forward.1} parent=1 // pred_region
      %45 = vsyncadd [#allocation6], 0
      %s46 = sshll.u32 %s3, 4
      %s47 = int_to_ptr.hbm [resolvable:$true] %s46
      %s48 = sshll.u32 [#allocation7], 4
      %s49 = int_to_ptr.vmem [resolvable:$true] %s48
      %54 = dma.hbm_to_vmem [thread:$0]  %s47, 2048, %s49, [#allocation6], 128, 128, 8
    $region17: #{net_forward.1} parent=1 // pred_fallthru
      _
    // Predicated region
    $region18: #{net_forward.1} parent=1 // pred_check
      _
    $region19: #{net_forward.1} parent=1 // pred_check_branch
      %56 = sbr.rel (0) target = $region21
    $region20: #{net_forward.1} parent=1 // pred_region
      _
    $region21: #{net_forward.1} parent=1 // pred_fallthru
      _
    // Predicated region
    $region22: #{net_forward.1} parent=1 // pred_check
      _
    $region23: #{net_forward.1} parent=1 // pred_check_branch
      %58 = sbr.rel (0) target = $region25
    $region24: #{net_forward.1} parent=1 // pred_region
      %60 = vsyncadd [#allocation9], 0
      %s61 = sshll.u32 %s5, 4
      %s62 = int_to_ptr.hbm [resolvable:$true] %s61
      %s63 = sshll.u32 [#allocation8], 4
      %s64 = int_to_ptr.vmem [resolvable:$true] %s63
      %69 = dma.hbm_to_vmem [thread:$0]  %s62, 2048, %s64, [#allocation9], 128, 128, 8
    $region25: #{net_forward.1} parent=1 // pred_fallthru
      _
    // Predicated region
    $region26: #{net_forward.1} parent=1 // pred_check
      _
    $region27: #{net_forward.1} parent=1 // pred_check_branch
      %71 = sbr.rel (0) target = $region29
    $region28: #{net_forward.1} parent=1 // pred_region
      _
    $region29: #{net_forward.1} parent=1 // pred_fallthru
      _
    // Predicated region
    $region30: #{net_forward.1} parent=1 // pred_check
      _
    $region31: #{net_forward.1} parent=1 // pred_check_branch
      %73 = sbr.rel (0) target = $region33
    $region32: #{net_forward.1} parent=1 // pred_region
      %75 = dma.done [#allocation3], 128
    $region33: #{net_forward.1} parent=1 // pred_fallthru
      _
    // Predicated region
    $region34: #{net_forward.1} parent=1 // pred_check
      _
    $region35: #{net_forward.1} parent=1 // pred_check_branch
      %77 = sbr.rel (0) target = $region37
    $region36: #{net_forward.1} parent=1 // pred_region
      %79 = dma.done [#allocation6], 512
    $region37: #{net_forward.1} parent=1 // pred_fallthru
      _
    // Predicated region
    $region38: #{net_forward.1} parent=1 // pred_check
      _
    $region39: #{net_forward.1} parent=1 // pred_check_branch
      %81 = sbr.rel (0) target = $region41
    $region40: #{net_forward.1} parent=1 // pred_region
      %83 = dma.done [#allocation6], 2048
    $region41: #{net_forward.1} parent=1 // pred_fallthru
      _
    // Predicated region
    $region42: #{net_forward.1} parent=1 // pred_check
      _
    $region43: #{net_forward.1} parent=1 // pred_check_branch
      %85 = sbr.rel (0) target = $region45
    $region44: #{net_forward.1} parent=1 // pred_region
      %87 = dma.done [#allocation9], 2048
    $region45: #{net_forward.1} parent=1 // pred_fallthru
      _
    %v88 = vld [vmem:[#allocation2] sm:$0xff]
    %v89 = vld [vmem:[#allocation5] sm:$0xff]
    %v90 = vld [vmem:[#allocation5 + $0x8] sm:$0xff]
    %v91 = vld [vmem:[#allocation5 + $0x10] sm:$0xff]
    %v92 = vld [vmem:[#allocation5 + $0x18] sm:$0xff]
    %v93 = vld [vmem:[%s2] sm:$0x1]
    %v95 = vperm.slane %v93, 0
    %vm97 = vcmask 261120
    %v99 = vsel %vm97, %v88, 0
    %101 = vmatpush.msra.mxu0 0.0
    %102 = vmatpush.msra.mxu0 0.0
    %103 = vmatpush.msra.mxu0 0.0
    %104 = vmatpush.msra.mxu0 0.0
    %105 = vmatpush.msra.mxu0 0.0
    %106 = vmatpush.msra.mxu0 0.0
    %107 = vmatpush.msra.mxu0 0.0
    %108 = vmatpush.msra.mxu0 0.0
    %109 = vmatpush.msra.mxu0 0.0
    %110 = vmatpush.msra.mxu0 0.0
    %111 = vmatpush.msra.mxu0 0.0
    %112 = vmatpush.msra.mxu0 0.0
    %113 = vmatpush.msra.mxu0 %v92
    %114 = vmatpush.msra.mxu0 %v91
    %115 = vmatpush.msra.mxu0 %v90
    %116 = vmatpush.msra.mxu0 %v89
    %117 = vmatmul.f32.gmra.mxu0 %v99
    %v118 = vpop.f32.mrf.mxu0
    %v119 = vadd.f32 %v95, %v118
    %120 = vdwg.mxu0
    %v121 = vmax.f32 %v119, 0.0
    %v122 = vld [vmem:[#allocation7] sm:$0xff]
    %v123 = vld [vmem:[#allocation7 + $0x8] sm:$0xff]
    %v124 = vld [vmem:[#allocation7 + $0x10] sm:$0xff]
    %v125 = vld [vmem:[#allocation7 + $0x18] sm:$0xff]
    %v126 = vld [vmem:[#allocation7 + $0x20] sm:$0xff]
    %v127 = vld [vmem:[#allocation7 + $0x28] sm:$0xff]
    %v128 = vld [vmem:[#allocation7 + $0x30] sm:$0xff]
    %v129 = vld [vmem:[#allocation7 + $0x38] sm:$0xff]
    %v130 = vld [vmem:[#allocation7 + $0x40] sm:$0xff]
    %v131 = vld [vmem:[#allocation7 + $0x48] sm:$0xff]
    %v132 = vld [vmem:[#allocation7 + $0x50] sm:$0xff]
    %v133 = vld [vmem:[#allocation7 + $0x58] sm:$0xff]
    %v134 = vld [vmem:[#allocation7 + $0x60] sm:$0xff]
    %v135 = vld [vmem:[#allocation7 + $0x68] sm:$0xff]
    %v136 = vld [vmem:[#allocation7 + $0x70] sm:$0xff]
    %v137 = vld [vmem:[#allocation7 + $0x78] sm:$0xff]
    %v138 = vld [vmem:[%s4] sm:$0x1]
    %v140 = vperm.slane %v138, 0
    %142 = vmatpush.msra.mxu0 %v137
    %143 = vmatpush.msra.mxu0 %v136
    %144 = vmatpush.msra.mxu0 %v135
    %145 = vmatpush.msra.mxu0 %v134
    %146 = vmatpush.msra.mxu0 %v133
    %147 = vmatpush.msra.mxu0 %v132
    %148 = vmatpush.msra.mxu0 %v131
    %149 = vmatpush.msra.mxu0 %v130
    %150 = vmatpush.msra.mxu0 %v129
    %151 = vmatpush.msra.mxu0 %v128
    %152 = vmatpush.msra.mxu0 %v127
    %153 = vmatpush.msra.mxu0 %v126
    %154 = vmatpush.msra.mxu0 %v125
    %155 = vmatpush.msra.mxu0 %v124
    %156 = vmatpush.msra.mxu0 %v123
    %157 = vmatpush.msra.mxu0 %v122
    %158 = vmatmul.f32.gmra.mxu0 %v121
    %v159 = vpop.f32.mrf.mxu0
    %v160 = vadd.f32 %v140, %v159
    %161 = vdwg.mxu0
    %v162 = vmax.f32 %v160, 0.0
    %v163 = vld [vmem:[#allocation8] sm:$0xff]
    %v164 = vld [vmem:[#allocation8 + $0x8] sm:$0xff]
    %v165 = vld [vmem:[#allocation8 + $0x10] sm:$0xff]
    %v166 = vld [vmem:[#allocation8 + $0x18] sm:$0xff]
    %v167 = vld [vmem:[#allocation8 + $0x20] sm:$0xff]
    %v168 = vld [vmem:[#allocation8 + $0x28] sm:$0xff]
    %v169 = vld [vmem:[#allocation8 + $0x30] sm:$0xff]
    %v170 = vld [vmem:[#allocation8 + $0x38] sm:$0xff]
    %v171 = vld [vmem:[#allocation8 + $0x40] sm:$0xff]
    %v172 = vld [vmem:[#allocation8 + $0x48] sm:$0xff]
    %v173 = vld [vmem:[#allocation8 + $0x50] sm:$0xff]
    %v174 = vld [vmem:[#allocation8 + $0x58] sm:$0xff]
    %v175 = vld [vmem:[#allocation8 + $0x60] sm:$0xff]
    %v176 = vld [vmem:[#allocation8 + $0x68] sm:$0xff]
    %v177 = vld [vmem:[#allocation8 + $0x70] sm:$0xff]
    %v178 = vld [vmem:[#allocation8 + $0x78] sm:$0xff]
    %v179 = vld [vmem:[%s6] sm:$0x1]
    %v181 = vperm.slane %v179, 0
    %183 = vmatpush.msra.mxu0 %v178
    %184 = vmatpush.msra.mxu0 %v177
    %185 = vmatpush.msra.mxu0 %v176
    %186 = vmatpush.msra.mxu0 %v175
    %187 = vmatpush.msra.mxu0 %v174
    %188 = vmatpush.msra.mxu0 %v173
    %189 = vmatpush.msra.mxu0 %v172
    %190 = vmatpush.msra.mxu0 %v171
    %191 = vmatpush.msra.mxu0 %v170
    %192 = vmatpush.msra.mxu0 %v169
    %193 = vmatpush.msra.mxu0 %v168
    %194 = vmatpush.msra.mxu0 %v167
    %195 = vmatpush.msra.mxu0 %v166
    %196 = vmatpush.msra.mxu0 %v165
    %197 = vmatpush.msra.mxu0 %v164
    %198 = vmatpush.msra.mxu0 %v163
    %199 = vmatmul.f32.gmra.mxu0 %v162
    %v200 = vpop.f32.mrf.mxu0
    %v201 = vadd.f32 %v181, %v200
    %202 = vdwg.mxu0
    %203 = vst [vmem:[#allocation10] sm:$0xff] %v201
    // Predicated region
    $region46: #{net_forward.1} parent=1 // pred_check
      _
    $region47: #{net_forward.1} parent=1 // pred_check_branch
      %205 = sbr.rel (0) target = $region49
    $region48: #{net_forward.1} parent=1 // pred_region
      %207 = vsyncadd [#allocation4], 0
      %s209 = sshll.u32 [#allocation10], 4
      %s210 = int_to_ptr.vmem [resolvable:$true] %s209
      %s211 = sshll.u32 %s7, 4
      %s212 = int_to_ptr.hbm [resolvable:$true] %s211
      %214 = dma.vmem_to_hbm [thread:$0]  %s210, 128, %s212, [#allocation4]
    $region49: #{net_forward.1} parent=1 // pred_fallthru
      _
    // Predicated region
    $region50: #{net_forward.1} parent=1 // pred_check
      _
    $region51: #{net_forward.1} parent=1 // pred_check_branch
      %216 = sbr.rel (0) target = $region53
    $region52: #{net_forward.1} parent=1 // pred_region
      %218 = dma.done [#allocation4], 128
    $region53: #{net_forward.1} parent=1 // pred_fallthru
      _
    %219 = vsyncpa [#allocation3], 1
    %220 = vsyncpa [#allocation6], 1
    %221 = vsyncpa [#allocation9], 1
    %222 = vsyncpa [#allocation4], 1

</llo_original>
